<compile_context>
chip_gen: v6e
topology: v6e:2x2x1
jax: 0.10.0
libtpu: 0.0.40
codegen_flags: <defaults>
</compile_context>

<pallas_src>
import jax
import jax.numpy as jnp
from jax import lax
from jax.experimental import pallas as pl
from jax.experimental.pallas import tpu as pltpu


def _round_up(x: int, m: int) -> int:
    return (x + m - 1) // m * m


def _padded_vmem_bytes(shape, dtype) -> int:
    """VMEM footprint of a 2-D array after (sublane, lane) tile padding."""
    r, c = shape
    itemsize = jnp.dtype(dtype).itemsize
    sublane = max(8, 32 // itemsize)          # 8 for f32, 16 for bf16
    return _round_up(max(r, 1), sublane) * _round_up(max(c, 1), 128) * itemsize


def _make_scores_kernel(n_actual: int, tile_n: int):
    """Per-tile raw attention scores, written lane-dense as a (1, tile_n) row."""

    def kernel(para_ref, query_ref, wp_ref, wq_ref, bq_ref, av_ref, out_ref):
        i = pl.program_id(0)

        # Grid-invariant query path, recomputed per tile (tiny matvec; a
        # pl.when(i == 0) scratch init would be unsafe on a "parallel" axis).
        q_lin = jnp.dot(query_ref[...], wq_ref[...],
                        preferred_element_type=jnp.float32) + bq_ref[...]       # (1, D)

        para_lin = jnp.dot(para_ref[...], wp_ref[...],
                           preferred_element_type=jnp.float32)                   # (TN, D)
        s = jnp.tanh(para_lin + q_lin)                                           # (TN, D)
        # TODO(synk): on v7x, if the EUP slot saturates, run tanh in bf16
        #   (cast para_lin + q_lin to bf16 before tanh; keep the reduce in f32).

        # Contract D and land the scores lane-dense (1, TN) in one transposed-RHS
        # MXU op -- no (TN, 1) column intermediate, no sublane->lane relayout.
        e = jnp.einsum("od,nd->on", av_ref[...], s,
                       preferred_element_type=jnp.float32)                       # (1, TN)

        # Ragged boundary tile: rows >= n_actual contain whatever was in the DMA
        # buffer; mask their scores to -inf so the softmax ignores them.
        col = lax.broadcasted_iota(jnp.int32, e.shape, 1) + i * tile_n
        out_ref[...] = jnp.where(col < n_actual, e, -jnp.inf)

    return kernel


def _log_softmax_kernel(e_ref, o_ref):
    """log_softmax over the last axis of a small resident (1, N_pad) vector."""
    e = e_ref[...]
    m = jnp.max(e, axis=-1, keepdims=True)
    z = jnp.sum(jnp.exp(e - m), axis=-1, keepdims=True)   # padded -inf -> exp 0
    o_ref[...] = e - (m + jnp.log(z))


def attention_model_forward(para_encode_state, query, w_para, w_query,
                            b_query, attention_vec, *, block_n: int = 512):
    """Pallas forward pass matching AttentionModel.forward (eval mode).

    para_encode_state: (N, para_dim)
    query:             (1, query_dim)
    w_para:            (para_dim, output_dim)   == PyTorch para_weight.weight.T
    w_query:           (query_dim, output_dim)  == PyTorch query_weight.weight.T
    b_query:           (1, output_dim)
    attention_vec:     (1, output_dim)
    returns:           (1, N) float32 log-softmax attention scores.
    """
    n, para_dim = para_encode_state.shape

    # Keep the big tensor in its stored dtype (casting it in the wrapper would
    # add a full extra HBM pass); only the tiny weight is cast to match.
    para = para_encode_state
    if para.dtype == jnp.bfloat16:
        w_p = w_para.astype(jnp.bfloat16)
    else:
        para = para.astype(jnp.float32)
        w_p = w_para.astype(jnp.float32)
    query = query.astype(jnp.float32)
    w_q = w_query.astype(jnp.float32)
    b_q = b_query.astype(jnp.float32)
    av = attention_vec.astype(jnp.float32)

    # N tiling: large tiles so per-step overhead is hidden.  If all of N fits in
    # one tile, use a full-extent block (always layout-legal); otherwise keep the
    # tile a multiple of 128 so the output stores stay lane-dense/unmasked.
    if n <= block_n:
        tile_n = n
    else:
        tile_n = max(128, (block_n // 128) * 128)
    num_tiles = pl.cdiv(n, tile_n)
    n_pad = num_tiles * tile_n

    resident = lambda arr: pl.BlockSpec(arr.shape, lambda i: (0, 0))

    # VMEM budget from actual lane-padded buffer sizes (double buffers for the
    # pipelined operands + resident small operands), with 2x headroom, clamped
    # under v7x's 64 MiB physical VMEM.
    need = (2 * _padded_vmem_bytes((tile_n, para_dim), para.dtype)
            + 2 * _padded_vmem_bytes((1, tile_n), jnp.float32)
            + 2 * sum(_padded_vmem_bytes(a.shape, a.dtype)
                      for a in (query, w_p, w_q, b_q, av)))
    vmem_limit = int(min(max(2 * need, 32 * 1024 * 1024), 56 * 1024 * 1024))

    scores = pl.pallas_call(
        _make_scores_kernel(n, tile_n),
        out_shape=jax.ShapeDtypeStruct((1, n_pad), jnp.float32),
        grid=(num_tiles,),
        in_specs=[
            pl.BlockSpec((tile_n, para_dim), lambda i: (i, 0)),   # streamed tiles
            resident(query),
            resident(w_p),
            resident(w_q),
            resident(b_q),
            resident(av),
        ],
        out_specs=pl.BlockSpec((1, tile_n), lambda i: (0, i)),    # lane-dense rows
        compiler_params=pltpu.CompilerParams(
            dimension_semantics=("parallel",),   # no carry -> shardable across TCs
            vmem_limit_bytes=vmem_limit,
        ),
    )(para, query, w_p, w_q, b_q, av)

    # O(N) normalization of the tiny (1, N_pad) score vector in a second,
    # whole-array pallas_call (keeps the main grid axis carry-free/parallel).
    if n_pad <= (1 << 18):
        need2 = 2 * _padded_vmem_bytes((1, n_pad), jnp.float32)
        log_probs = pl.pallas_call(
            _log_softmax_kernel,
            out_shape=jax.ShapeDtypeStruct((1, n_pad), jnp.float32),
            compiler_params=pltpu.CompilerParams(
                vmem_limit_bytes=int(min(max(2 * need2, 32 * 1024 * 1024),
                                         56 * 1024 * 1024)),
            ),
        )(scores)
    else:
        # TODO(synk): for extreme N, tile the normalization instead of falling
        # back to XLA (cost is O(N) on a tiny vector either way).
        log_probs = jax.nn.log_softmax(scores, axis=-1)

    return log_probs[:, :n]


def _reference(para, query, w_para, w_query, b_query, attn_vec):
    para_lin = jnp.dot(para, w_para, precision="highest")
    q_lin = jnp.dot(query, w_query, precision="highest") + b_query
    s = jnp.tanh(para_lin + q_lin)
    e = jnp.dot(attn_vec, s.T, precision="highest")
    return jax.nn.log_softmax(e, axis=-1)


if __name__ == "__main__":
    key = jax.random.PRNGKey(0)
    k_q, k_wp, k_wq, k_bq, k_av, k_para = jax.random.split(key, 6)

    para_dim, query_dim, output_dim = 32, 16, 32
    query = jax.random.normal(k_q, (1, query_dim), dtype=jnp.float32)
    w_para = jax.random.normal(k_wp, (para_dim, output_dim), dtype=jnp.float32) * 0.1
    w_query = jax.random.normal(k_wq, (query_dim, output_dim), dtype=jnp.float32) * 0.1
    b_query = jax.random.normal(k_bq, (1, output_dim), dtype=jnp.float32) * 0.1
    att_vec = jax.random.normal(k_av, (1, output_dim), dtype=jnp.float32)

    # N = 8: single tiny full-extent tile; N = 300: single ragged-size tile;
    # N = 1100: multi-tile grid (512, 512, ragged boundary tile).
    for n in (8, 300, 1100):
        para = jax.random.normal(jax.random.fold_in(k_para, n), (n, para_dim),
                                 dtype=jnp.float32)
        out = attention_model_forward(para, query, w_para, w_query, b_query, att_vec)
        out = jax.block_until_ready(out)
        ref = _reference(para, query, w_para, w_query, b_query, att_vec)
        assert out.shape == (1, n), (out.shape, n)
        assert bool(jnp.all(jnp.isfinite(out))), f"non-finite output (N={n})"
        assert jnp.allclose(out, ref, atol=2e-3, rtol=2e-3), f"mismatch (N={n})"

    # TODO(synk): training-mode nn.Dropout (stochastic masking) is not implemented;
    # the kernel matches eval-mode (inference) semantics.
    print("KERNEL_OK")
</pallas_src>

<mosaic_0001>
module attributes {stable_mosaic.version = 11 : i64} {
  func.func @kernel(%arg0: i32, %arg1: memref<8x32xf32, #tpu.memory_space<vmem>>, %arg2: memref<1x16xf32, #tpu.memory_space<vmem>>, %arg3: memref<32x32xf32, #tpu.memory_space<vmem>>, %arg4: memref<16x32xf32, #tpu.memory_space<vmem>>, %arg5: memref<1x32xf32, #tpu.memory_space<vmem>>, %arg6: memref<1x32xf32, #tpu.memory_space<vmem>>, %arg7: memref<1x8xf32, #tpu.memory_space<vmem>>) attributes {dimension_semantics = [#tpu.dimension_semantics<parallel>], iteration_bounds = array<i64: 1>, scalar_prefetch = 0 : i64, scratch_operands = 0 : i64, tpu.core_type = #tpu.core_type<tc>, window_params = [{transform_indices = @transform_0, window_bounds = array<i64: 8, 32>}, {pipeline_mode = #tpu.pipeline_mode<synchronous>, transform_indices = @transform_1, window_bounds = array<i64: 1, 16>}, {pipeline_mode = #tpu.pipeline_mode<synchronous>, transform_indices = @transform_2, window_bounds = array<i64: 32, 32>}, {pipeline_mode = #tpu.pipeline_mode<synchronous>, transform_indices = @transform_3, window_bounds = array<i64: 16, 32>}, {pipeline_mode = #tpu.pipeline_mode<synchronous>, transform_indices = @transform_4, window_bounds = array<i64: 1, 32>}, {pipeline_mode = #tpu.pipeline_mode<synchronous>, transform_indices = @transform_5, window_bounds = array<i64: 1, 32>}, {transform_indices = @transform_6, window_bounds = array<i64: 1, 8>}]} {
    %c0 = arith.constant 0 : index
    %c0_0 = arith.constant 0 : index
    %0 = vector.load %arg2[%c0, %c0_0] : memref<1x16xf32, #tpu.memory_space<vmem>>, vector<1x16xf32>
    %c0_1 = arith.constant 0 : index
    %c0_2 = arith.constant 0 : index
    %1 = vector.load %arg4[%c0_1, %c0_2] : memref<16x32xf32, #tpu.memory_space<vmem>>, vector<16x32xf32>
    %cst = arith.constant dense<0.000000e+00> : vector<1x32xf32>
    %2 = tpu.matmul %0, %1, %cst {dimension_numbers = #tpu.dot_dimension_numbers<[1], [0], [0], [1], [0, 0, 1, 1], [], []>} : vector<1x16xf32>, vector<16x32xf32>, vector<1x32xf32> -> vector<1x32xf32>
    %c0_3 = arith.constant 0 : index
    %c0_4 = arith.constant 0 : index
    %3 = vector.load %arg5[%c0_3, %c0_4] : memref<1x32xf32, #tpu.memory_space<vmem>>, vector<1x32xf32>
    %4 = arith.addf %2, %3 : vector<1x32xf32>
    %c0_5 = arith.constant 0 : index
    %c0_6 = arith.constant 0 : index
    %5 = vector.load %arg1[%c0_5, %c0_6] : memref<8x32xf32, #tpu.memory_space<vmem>>, vector<8x32xf32>
    %c0_7 = arith.constant 0 : index
    %c0_8 = arith.constant 0 : index
    %6 = vector.load %arg3[%c0_7, %c0_8] : memref<32x32xf32, #tpu.memory_space<vmem>>, vector<32x32xf32>
    %cst_9 = arith.constant dense<0.000000e+00> : vector<8x32xf32>
    %7 = tpu.matmul %5, %6, %cst_9 {dimension_numbers = #tpu.dot_dimension_numbers<[1], [0], [0], [1], [0, 0, 1, 1], [], []>} : vector<8x32xf32>, vector<32x32xf32>, vector<8x32xf32> -> vector<8x32xf32>
    %8 = vector.broadcast %4 : vector<1x32xf32> to vector<8x32xf32>
    %9 = arith.addf %7, %8 : vector<8x32xf32>
    %10 = math.tanh %9 : vector<8x32xf32>
    %c0_10 = arith.constant 0 : index
    %c0_11 = arith.constant 0 : index
    %11 = vector.load %arg6[%c0_10, %c0_11] : memref<1x32xf32, #tpu.memory_space<vmem>>, vector<1x32xf32>
    "tpu.trace_start"() <{level = 10 : i32, message = "od,nd->on"}> : () -> ()
    %cst_12 = arith.constant dense<0.000000e+00> : vector<1x8xf32>
    %12 = tpu.matmul %11, %10, %cst_12 {dimension_numbers = #tpu.dot_dimension_numbers<[1], [1], [0], [0], [0, 0, 1, 0], [], []>} : vector<1x32xf32>, vector<8x32xf32>, vector<1x8xf32> -> vector<1x8xf32>
    "tpu.trace_stop"() : () -> ()
    %13 = tpu.iota {dimensions = array<i32: 1>} : vector<1x8xi32>
    %c8_i32 = arith.constant 8 : i32
    %14 = arith.muli %arg0, %c8_i32 : i32
    %15 = vector.broadcast %14 : i32 to vector<1x8xi32>
    %16 = arith.addi %13, %15 : vector<1x8xi32>
    %c8_i32_13 = arith.constant 8 : i32
    %17 = vector.broadcast %c8_i32_13 : i32 to vector<1x8xi32>
    %18 = arith.cmpi slt, %16, %17 : vector<1x8xi32>
    %cst_14 = arith.constant 0xFF800000 : f32
    %19 = vector.broadcast %cst_14 : f32 to vector<1x8xf32>
    %20 = arith.select %18, %12, %19 : vector<1x8xi1>, vector<1x8xf32>
    %c0_15 = arith.constant 0 : index
    %c0_16 = arith.constant 0 : index
    %21 = vector.load %arg7[%c0_15, %c0_16] : memref<1x8xf32, #tpu.memory_space<vmem>>, vector<1x8xf32>
    tpu.vector_store %arg7[%c0_15, %c0_16], %20 {strides = array<i32>} : memref<1x8xf32, #tpu.memory_space<vmem>>, vector<1x8xf32>,
    return
  }
  func.func @transform_0(%arg0: i32) -> (i32, i32) {
    %c0_i32 = arith.constant 0 : i32
    %c0_i32_0 = arith.constant 0 : i32
    return %arg0, %c0_i32 : i32, i32
  }
  func.func @transform_1(%arg0: i32) -> (i32, i32) {
    %c0_i32 = arith.constant 0 : i32
    %c0_i32_0 = arith.constant 0 : i32
    %c0_i32_1 = arith.constant 0 : i32
    return %c0_i32, %c0_i32_0 : i32, i32
  }
  func.func @transform_2(%arg0: i32) -> (i32, i32) {
    %c0_i32 = arith.constant 0 : i32
    %c0_i32_0 = arith.constant 0 : i32
    %c0_i32_1 = arith.constant 0 : i32
    return %c0_i32, %c0_i32_0 : i32, i32
  }
  func.func @transform_3(%arg0: i32) -> (i32, i32) {
    %c0_i32 = arith.constant 0 : i32
    %c0_i32_0 = arith.constant 0 : i32
    %c0_i32_1 = arith.constant 0 : i32
    return %c0_i32, %c0_i32_0 : i32, i32
  }
  func.func @transform_4(%arg0: i32) -> (i32, i32) {
    %c0_i32 = arith.constant 0 : i32
    %c0_i32_0 = arith.constant 0 : i32
    %c0_i32_1 = arith.constant 0 : i32
    return %c0_i32, %c0_i32_0 : i32, i32
  }
  func.func @transform_5(%arg0: i32) -> (i32, i32) {
    %c0_i32 = arith.constant 0 : i32
    %c0_i32_0 = arith.constant 0 : i32
    %c0_i32_1 = arith.constant 0 : i32
    return %c0_i32, %c0_i32_0 : i32, i32
  }
  func.func @transform_6(%arg0: i32) -> (i32, i32) {
    %c0_i32 = arith.constant 0 : i32
    %c0_i32_0 = arith.constant 0 : i32
    return %c0_i32, %arg0 : i32, i32
  }
}

</mosaic_0001>

<llo_original>
// kernel: tpu_custom_call.1
$region0: #{tpu_custom_call.1}
  #allocation0 [shape = 'u32[]', space=smem, size = 0x4, offset = 0x4, fixed_abs, tag = 'smem constant byte address 0x4 - core index']
  #allocation1 [shape = 'u32[144,128]{1,0:T(1,128)}', space=vmem, size = 0x12000, scoped, tag = 'internal scratch']
  %s0 = inlined_call_operand.hbm [shape: f32[8,32], index: 0, kind: input, shape index: {}]
  %s1 = inlined_call_operand.vmem [shape: f32[1,16], index: 1, kind: input, shape index: {}]
  %s2 = inlined_call_operand.hbm [shape: f32[32,32], index: 2, kind: input, shape index: {}]
  %s3 = inlined_call_operand.hbm [shape: f32[16,32], index: 3, kind: input, shape index: {}]
  %s4 = inlined_call_operand.vmem [shape: f32[1,32], index: 4, kind: input, shape index: {}]
  %s5 = inlined_call_operand.vmem [shape: f32[1,32], index: 5, kind: input, shape index: {}]
  %s6 = inlined_call_operand.hbm [shape: f32[1,8], index: 6, kind: output, shape index: {}]
  %s7 = sld [smem:[#allocation0]]
  $region46: #{tpu_custom_call.1} parent=0
    _
  %s9 = ssub.s32 1, %s7
  %s10 = scalar_select 0, %s9, %s7
  $region1: #{tpu_custom_call.1} parent=0
    #allocation2 [shape = 'u8[4096]{0}', space=vmem, size = 0x1000, scoped, tag = 'input window, operand 0, single buffered']
    #allocation3 [shape = 's32[1]{0}', space=sflag, size = 0x4, scoped, tag = 'scoped memory for tpu_custom_call.1']
    #allocation4 [shape = 's32[1]{0}', space=sflag, size = 0x4, scoped, tag = 'scoped memory for tpu_custom_call.1']
    #allocation5 [shape = 'u8[16384]{0}', space=vmem, size = 0x4000, scoped, tag = 'input window, operand 2, single buffered']
    #allocation6 [shape = 's32[1]{0}', space=sflag, size = 0x4, scoped, tag = 'scoped memory for tpu_custom_call.1']
    #allocation7 [shape = 'u8[8192]{0}', space=vmem, size = 0x2000, scoped, tag = 'input window, operand 3, single buffered']
    #allocation8 [shape = 'u8[512]{0}', space=vmem, size = 0x400, scoped, tag = 'output window, operand 0, single buffered']
    %11 = vsyncpa [#allocation3], 0
    %12 = vsyncpa [#allocation6], 0
    %13 = vsyncpa [#allocation4], 0
    // Predicated region
    $region2: #{tpu_custom_call.1} parent=1 // pred_check
      _
    $region3: #{tpu_custom_call.1} parent=1 // pred_check_branch
      %15 = sbr.rel (0) target = $region5
    $region4: #{tpu_custom_call.1} parent=1 // pred_region
      %s17 = ssub.s32 128, 128
      %18 = vsyncadd [#allocation3], %s17
      %s20 = sshll.u32 [#allocation2], 4
      %s21 = int_to_ptr.vmem [resolvable:$true] %s20
      %23 = dma.hbm_to_vmem [thread:$0]  %s0, 128, %s21, [#allocation3]
    $region5: #{tpu_custom_call.1} parent=1 // pred_fallthru
      _
    // Predicated region
    $region6: #{tpu_custom_call.1} parent=1 // pred_check
      _
    $region7: #{tpu_custom_call.1} parent=1 // pred_check_branch
      %25 = sbr.rel (0) target = $region9
    $region8: #{tpu_custom_call.1} parent=1 // pred_region
      _
    $region9: #{tpu_custom_call.1} parent=1 // pred_fallthru
      _
    // Predicated region
    $region10: #{tpu_custom_call.1} parent=1 // pred_check
      _
    $region11: #{tpu_custom_call.1} parent=1 // pred_check_branch
      %27 = sbr.rel (0) target = $region13
    $region12: #{tpu_custom_call.1} parent=1 // pred_region
      %s29 = ssub.s32 512, 512
      %30 = vsyncadd [#allocation6], %s29
      %s31 = sshll.u32 [#allocation5], 4
      %s32 = int_to_ptr.vmem [resolvable:$true] %s31
      %37 = dma.hbm_to_vmem [thread:$0]  %s2, 512, %s32, [#allocation6], 128, 128, 8
    $region13: #{tpu_custom_call.1} parent=1 // pred_fallthru
      _
    // Predicated region
    $region14: #{tpu_custom_call.1} parent=1 // pred_check
      _
    $region15: #{tpu_custom_call.1} parent=1 // pred_check_branch
      %39 = sbr.rel (0) target = $region17
    $region16: #{tpu_custom_call.1} parent=1 // pred_region
      %s41 = ssub.s32 256, 256
      %42 = vsyncadd [#allocation6], %s41
      %s43 = sshll.u32 [#allocation7], 4
      %s44 = int_to_ptr.vmem [resolvable:$true] %s43
      %49 = dma.hbm_to_vmem [thread:$0]  %s3, 256, %s44, [#allocation6], 128, 128, 8
    $region17: #{tpu_custom_call.1} parent=1 // pred_fallthru
      _
    // Predicated region
    $region18: #{tpu_custom_call.1} parent=1 // pred_check
      _
    $region19: #{tpu_custom_call.1} parent=1 // pred_check_branch
      %51 = sbr.rel (0) target = $region21
    $region20: #{tpu_custom_call.1} parent=1 // pred_region
      _
    $region21: #{tpu_custom_call.1} parent=1 // pred_fallthru
      _
    // Predicated region
    $region22: #{tpu_custom_call.1} parent=1 // pred_check
      _
    $region23: #{tpu_custom_call.1} parent=1 // pred_check_branch
      %53 = sbr.rel (0) target = $region25
    $region24: #{tpu_custom_call.1} parent=1 // pred_region
      _
    $region25: #{tpu_custom_call.1} parent=1 // pred_fallthru
      _
    // Predicated region
    $region26: #{tpu_custom_call.1} parent=1 // pred_check
      _
    $region27: #{tpu_custom_call.1} parent=1 // pred_check_branch
      %55 = sbr.rel (0) target = $region29
    $region28: #{tpu_custom_call.1} parent=1 // pred_region
      %56 = dma.done [#allocation3], 128
    $region29: #{tpu_custom_call.1} parent=1 // pred_fallthru
      _
    // Predicated region
    $region30: #{tpu_custom_call.1} parent=1 // pred_check
      _
    $region31: #{tpu_custom_call.1} parent=1 // pred_check_branch
      %58 = sbr.rel (0) target = $region33
    $region32: #{tpu_custom_call.1} parent=1 // pred_region
      %59 = dma.done [#allocation6], 512
    $region33: #{tpu_custom_call.1} parent=1 // pred_fallthru
      _
    // Predicated region
    $region34: #{tpu_custom_call.1} parent=1 // pred_check
      _
    $region35: #{tpu_custom_call.1} parent=1 // pred_check_branch
      %61 = sbr.rel (0) target = $region37
    $region36: #{tpu_custom_call.1} parent=1 // pred_region
      %62 = dma.done [#allocation6], 256
    $region37: #{tpu_custom_call.1} parent=1 // pred_fallthru
      _
    %v63 = vld [vmem:[%s1] sm:$0x1]
    %v64 = vld [vmem:[#allocation7] sm:$0xff]
    %v65 = vld [vmem:[#allocation7 + $0x8] sm:$0xff]
    %v66 = vld [vmem:[%s4] sm:$0x1]
    %vm67 = vcmask 130048
    %v69 = vsel %vm67, %v63, 0
    %71 = vmatprep.subr.mxu0 0.0
    %72 = vmatpush1.msra.mxu0 0.0
    %73 = vmatprep.subr.mxu0 0.0
    %74 = vmatpush1.msra.mxu0 0.0
    %75 = vmatprep.subr.mxu0 0.0
    %76 = vmatpush1.msra.mxu0 0.0
    %77 = vmatprep.subr.mxu0 0.0
    %78 = vmatpush1.msra.mxu0 0.0
    %79 = vmatprep.subr.mxu0 0.0
    %80 = vmatpush1.msra.mxu0 0.0
    %81 = vmatprep.subr.mxu0 0.0
    %82 = vmatpush1.msra.mxu0 0.0
    %83 = vmatprep.subr.mxu0 0.0
    %84 = vmatpush1.msra.mxu0 0.0
    %85 = vmatprep.subr.mxu0 0.0
    %86 = vmatpush1.msra.mxu0 0.0
    %87 = vmatprep.subr.mxu0 0.0
    %88 = vmatpush1.msra.mxu0 0.0
    %89 = vmatprep.subr.mxu0 0.0
    %90 = vmatpush1.msra.mxu0 0.0
    %91 = vmatprep.subr.mxu0 0.0
    %92 = vmatpush1.msra.mxu0 0.0
    %93 = vmatprep.subr.mxu0 0.0
    %94 = vmatpush1.msra.mxu0 0.0
    %95 = vmatprep.subr.mxu0 0.0
    %96 = vmatpush1.msra.mxu0 0.0
    %97 = vmatprep.subr.mxu0 0.0
    %98 = vmatpush1.msra.mxu0 0.0
    %99 = vmatprep.subr.mxu0 0.0
    %100 = vmatpush1.msra.mxu0 %v65
    %101 = vmatprep.subr.mxu0 0.0
    %102 = vmatpush1.msra.mxu0 %v64
    %103 = vmatprep.subr.mxu0 0.0
    %104 = vmatpush2.msra.mxu0 0.0
    %105 = vmatprep.subr.mxu0 0.0
    %106 = vmatpush2.msra.mxu0 0.0
    %107 = vmatprep.subr.mxu0 0.0
    %108 = vmatpush2.msra.mxu0 0.0
    %109 = vmatprep.subr.mxu0 0.0
    %110 = vmatpush2.msra.mxu0 0.0
    %111 = vmatprep.subr.mxu0 0.0
    %112 = vmatpush2.msra.mxu0 0.0
    %113 = vmatprep.subr.mxu0 0.0
    %114 = vmatpush2.msra.mxu0 0.0
    %115 = vmatprep.subr.mxu0 0.0
    %116 = vmatpush2.msra.mxu0 0.0
    %117 = vmatprep.subr.mxu0 0.0
    %118 = vmatpush2.msra.mxu0 0.0
    %119 = vmatprep.subr.mxu0 0.0
    %120 = vmatpush2.msra.mxu0 0.0
    %121 = vmatprep.subr.mxu0 0.0
    %122 = vmatpush2.msra.mxu0 0.0
    %123 = vmatprep.subr.mxu0 0.0
    %124 = vmatpush2.msra.mxu0 0.0
    %125 = vmatprep.subr.mxu0 0.0
    %126 = vmatpush2.msra.mxu0 0.0
    %127 = vmatprep.subr.mxu0 0.0
    %128 = vmatpush2.msra.mxu0 0.0
    %129 = vmatprep.subr.mxu0 0.0
    %130 = vmatpush2.msra.mxu0 0.0
    %131 = vmatprep.subr.mxu0 0.0
    %132 = vmatpush2.msra.mxu0 0.0
    %133 = vmatprep.subr.mxu0 0.0
    %134 = vmatpush2.msra.mxu0 0.0
    %135 = vmatprep.mubr.f32.mxu0 0.0
    %136 = vmatmul.mubr.f32.gmra.mxu0 %v69
    %v137 = vpop.f32.mrf.mxu0
    %v138 = vadd.f32 %v66, %v137
    %v139 = vpop.f32.mrf.mxu0
    %140 = vdwg.mxu0
    %v141 = vld [vmem:[#allocation2] sm:$0xff]
    %v142 = vld [vmem:[#allocation5] sm:$0xff]
    %v143 = vld [vmem:[#allocation5 + $0x8] sm:$0xff]
    %v144 = vld [vmem:[#allocation5 + $0x10] sm:$0xff]
    %v145 = vld [vmem:[#allocation5 + $0x18] sm:$0xff]
    %v146 = vlaneseq
    %v147 = vshrl.u32 %v146, 7
    %v148 = vsub.s32 0, %v147
    %v149 = vrot.slane %v138, %v148
    %vm150 = vcmask 261120
    %v152 = vsel %vm150, %v141, 0
    %154 = vmatprep.subr.mxu0 0.0
    %155 = vmatpush1.msra.mxu0 0.0
    %156 = vmatprep.subr.mxu0 0.0
    %157 = vmatpush1.msra.mxu0 0.0
    %158 = vmatprep.subr.mxu0 0.0
    %159 = vmatpush1.msra.mxu0 0.0
    %160 = vmatprep.subr.mxu0 0.0
    %161 = vmatpush1.msra.mxu0 0.0
    %162 = vmatprep.subr.mxu0 0.0
    %163 = vmatpush1.msra.mxu0 0.0
    %164 = vmatprep.subr.mxu0 0.0
    %165 = vmatpush1.msra.mxu0 0.0
    %166 = vmatprep.subr.mxu0 0.0
    %167 = vmatpush1.msra.mxu0 0.0
    %168 = vmatprep.subr.mxu0 0.0
    %169 = vmatpush1.msra.mxu0 0.0
    %170 = vmatprep.subr.mxu0 0.0
    %171 = vmatpush1.msra.mxu0 0.0
    %172 = vmatprep.subr.mxu0 0.0
    %173 = vmatpush1.msra.mxu0 0.0
    %174 = vmatprep.subr.mxu0 0.0
    %175 = vmatpush1.msra.mxu0 0.0
    %176 = vmatprep.subr.mxu0 0.0
    %177 = vmatpush1.msra.mxu0 0.0
    %178 = vmatprep.subr.mxu0 0.0
    %179 = vmatpush1.msra.mxu0 %v145
    %180 = vmatprep.subr.mxu0 0.0
    %181 = vmatpush1.msra.mxu0 %v144
    %182 = vmatprep.subr.mxu0 0.0
    %183 = vmatpush1.msra.mxu0 %v143
    %184 = vmatprep.subr.mxu0 0.0
    %185 = vmatpush1.msra.mxu0 %v142
    %186 = vmatprep.subr.mxu0 0.0
    %187 = vmatpush2.msra.mxu0 0.0
    %188 = vmatprep.subr.mxu0 0.0
    %189 = vmatpush2.msra.mxu0 0.0
    %190 = vmatprep.subr.mxu0 0.0
    %191 = vmatpush2.msra.mxu0 0.0
    %192 = vmatprep.subr.mxu0 0.0
    %193 = vmatpush2.msra.mxu0 0.0
    %194 = vmatprep.subr.mxu0 0.0
    %195 = vmatpush2.msra.mxu0 0.0
    %196 = vmatprep.subr.mxu0 0.0
    %197 = vmatpush2.msra.mxu0 0.0
    %198 = vmatprep.subr.mxu0 0.0
    %199 = vmatpush2.msra.mxu0 0.0
    %200 = vmatprep.subr.mxu0 0.0
    %201 = vmatpush2.msra.mxu0 0.0
    %202 = vmatprep.subr.mxu0 0.0
    %203 = vmatpush2.msra.mxu0 0.0
    %204 = vmatprep.subr.mxu0 0.0
    %205 = vmatpush2.msra.mxu0 0.0
    %206 = vmatprep.subr.mxu0 0.0
    %207 = vmatpush2.msra.mxu0 0.0
    %208 = vmatprep.subr.mxu0 0.0
    %209 = vmatpush2.msra.mxu0 0.0
    %210 = vmatprep.subr.mxu0 0.0
    %211 = vmatpush2.msra.mxu0 0.0
    %212 = vmatprep.subr.mxu0 0.0
    %213 = vmatpush2.msra.mxu0 0.0
    %214 = vmatprep.subr.mxu0 0.0
    %215 = vmatpush2.msra.mxu0 0.0
    %216 = vmatprep.subr.mxu0 0.0
    %217 = vmatpush2.msra.mxu0 0.0
    %218 = vmatprep.mubr.f32.mxu0 0.0
    %219 = vmatmul.mubr.f32.gmra.mxu0 %v152
    %v220 = vpop.f32.mrf.mxu0
    %v221 = vadd.f32 %v149, %v220
    %v222 = vpop.f32.mrf.mxu0
    %223 = vdwg.mxu0
    %v224 = vtanh.pop %v221
    %v225 = vld [vmem:[%s5] sm:$0x1]
    %v227 = vsel %vm150, %v225, 0
    %v230 = vsel %vm150, %v224, 0
    %232 = vmatprep.subr.mxu0 0.0
    %233 = vmatpush1.xpose.msra.mxu0 0.0
    %234 = vmatprep.subr.mxu0 0.0
    %235 = vmatpush1.xpose.msra.mxu0 0.0
    %236 = vmatprep.subr.mxu0 0.0
    %237 = vmatpush1.xpose.msra.mxu0 0.0
    %238 = vmatprep.subr.mxu0 0.0
    %239 = vmatpush1.xpose.msra.mxu0 0.0
    %240 = vmatprep.subr.mxu0 0.0
    %241 = vmatpush1.xpose.msra.mxu0 0.0
    %242 = vmatprep.subr.mxu0 0.0
    %243 = vmatpush1.xpose.msra.mxu0 0.0
    %244 = vmatprep.subr.mxu0 0.0
    %245 = vmatpush1.xpose.msra.mxu0 0.0
    %246 = vmatprep.subr.mxu0 0.0
    %247 = vmatpush1.xpose.msra.mxu0 0.0
    %248 = vmatprep.subr.mxu0 0.0
    %249 = vmatpush1.xpose.msra.mxu0 0.0
    %250 = vmatprep.subr.mxu0 0.0
    %251 = vmatpush1.xpose.msra.mxu0 0.0
    %252 = vmatprep.subr.mxu0 0.0
    %253 = vmatpush1.xpose.msra.mxu0 0.0
    %254 = vmatprep.subr.mxu0 0.0
    %255 = vmatpush1.xpose.msra.mxu0 0.0
    %256 = vmatprep.subr.mxu0 0.0
    %257 = vmatpush1.xpose.msra.mxu0 0.0
    %258 = vmatprep.subr.mxu0 0.0
    %259 = vmatpush1.xpose.msra.mxu0 0.0
    %260 = vmatprep.subr.mxu0 0.0
    %261 = vmatpush1.xpose.msra.mxu0 0.0
    %262 = vmatprep.subr.mxu0 0.0
    %263 = vmatpush1.xpose.msra.mxu0 %v230
    %264 = vmatprep.subr.mxu0 0.0
    %265 = vmatpush2.xpose.msra.mxu0 0.0
    %266 = vmatprep.subr.mxu0 0.0
    %267 = vmatpush2.xpose.msra.mxu0 0.0
    %268 = vmatprep.subr.mxu0 0.0
    %269 = vmatpush2.xpose.msra.mxu0 0.0
    %270 = vmatprep.subr.mxu0 0.0
    %271 = vmatpush2.xpose.msra.mxu0 0.0
    %272 = vmatprep.subr.mxu0 0.0
    %273 = vmatpush2.xpose.msra.mxu0 0.0
    %274 = vmatprep.subr.mxu0 0.0
    %275 = vmatpush2.xpose.msra.mxu0 0.0
    %276 = vmatprep.subr.mxu0 0.0
    %277 = vmatpush2.xpose.msra.mxu0 0.0
    %278 = vmatprep.subr.mxu0 0.0
    %279 = vmatpush2.xpose.msra.mxu0 0.0
    %280 = vmatprep.subr.mxu0 0.0
    %281 = vmatpush2.xpose.msra.mxu0 0.0
    %282 = vmatprep.subr.mxu0 0.0
    %283 = vmatpush2.xpose.msra.mxu0 0.0
    %284 = vmatprep.subr.mxu0 0.0
    %285 = vmatpush2.xpose.msra.mxu0 0.0
    %286 = vmatprep.subr.mxu0 0.0
    %287 = vmatpush2.xpose.msra.mxu0 0.0
    %288 = vmatprep.subr.mxu0 0.0
    %289 = vmatpush2.xpose.msra.mxu0 0.0
    %290 = vmatprep.subr.mxu0 0.0
    %291 = vmatpush2.xpose.msra.mxu0 0.0
    %292 = vmatprep.subr.mxu0 0.0
    %293 = vmatpush2.xpose.msra.mxu0 0.0
    %294 = vmatprep.subr.mxu0 0.0
    %295 = vmatpush2.xpose.msra.mxu0 0.0
    %296 = vmatprep.mubr.f32.mxu0 0.0
    %297 = vmatmul.mubr.f32.gmra.mxu0 %v227
    %v298 = vpop.f32.mrf.mxu0
    %v299 = vadd.f32 0.0, %v298
    %v300 = vpop.f32.mrf.mxu0
    %301 = vdwg.mxu0
    %v302 = vlaneseq
    %v303 = vand.u32 %v302, 127
    %s304 = smul.u32 0, 8
    %v305 = vstv %s304
    %v306 = vadd.s32 %v303, %v305
    %vm307 = vcmp.lt.s32.totalorder %v306, 8
    %v308 = vsel %vm307, %v299, -inf
    %vm309 = vcmask 57344
    %310 = vst.msk [vmem:[#allocation8] sm:$0x1] %vm309, %v308
    // Predicated region
    $region38: #{tpu_custom_call.1} parent=1 // pred_check
      _
    $region39: #{tpu_custom_call.1} parent=1 // pred_check_branch
      %312 = sbr.rel (0) target = $region41
    $region40: #{tpu_custom_call.1} parent=1 // pred_region
      %s314 = ssub.s32 16, 16
      %315 = vsyncadd [#allocation4], %s314
      %s317 = sshll.u32 [#allocation8], 4
      %s318 = int_to_ptr.vmem [resolvable:$true] %s317
      %320 = dma.vmem_to_hbm [thread:$0]  %s318, 16, %s6, [#allocation4]
    $region41: #{tpu_custom_call.1} parent=1 // pred_fallthru
      _
    // Predicated region
    $region42: #{tpu_custom_call.1} parent=1 // pred_check
      _
    $region43: #{tpu_custom_call.1} parent=1 // pred_check_branch
      %322 = sbr.rel (0) target = $region45
    $region44: #{tpu_custom_call.1} parent=1 // pred_region
      %323 = dma.done [#allocation4], 16
    $region45: #{tpu_custom_call.1} parent=1 // pred_fallthru
      _
    %324 = vsyncpa [#allocation3], 1
    %325 = vsyncpa [#allocation6], 1
    %326 = vsyncpa [#allocation4], 1

</llo_original>
